<compile_context>
chip_gen: v6e
topology: v6e:2x2x1
jax: 0.10.0
libtpu: 0.0.40
codegen_flags: <defaults>
</compile_context>

<pallas_src>
import jax
import jax.numpy as jnp
from jax.experimental import pallas as pl
from jax.experimental.pallas import tpu as pltpu


def _view_copy_kernel(x_ref, o_ref):
    # Identity copy of one (tm, 512) tile. The reshape semantics live in the
    # wrapper (row-major flatten); the kernel only moves bytes.
    o_ref[...] = x_ref[...]


def view_512(x: jax.Array) -> jax.Array:
    """Equivalent of PyTorch `input.view([-1, 512])` for a contiguous tensor.

    This is the forward path of the module: a metadata-only row-major reshape
    (XLA performs it for free, no HBM read/write).
    """
    total = x.size
    if total % 512 != 0:
        raise ValueError(f"total elements {total} not divisible by 512")
    return jnp.reshape(x, (-1, 512))


def view_512_materialized(x: jax.Array, *, max_tile_bytes: int = 4 << 20) -> jax.Array:
    """Materialized copy of `x.view([-1, 512])` via a tiled Pallas kernel.

    Only needed when a fresh buffer is genuinely required; otherwise prefer
    `view_512` (metadata-only).
    """
    total = x.size
    if total % 512 != 0:
        raise ValueError(f"total elements {total} not divisible by 512")
    m = total // 512

    # Row-major flatten (same memory order as torch .view on contiguous NCHW).
    x2d = jnp.reshape(x, (m, 512))

    itemsize = jnp.dtype(x.dtype).itemsize
    # Minimum second-to-last-dim tiling per dtype packing.
    sublane_min = {4: 8, 2: 16, 1: 32}.get(itemsize, 8)

    if m <= sublane_min:
        # Full-extent block along rows (always legal, regardless of tiling min).
        tm = m
    else:
        # Largest row tile that (a) is a multiple of the sublane minimum,
        # (b) keeps one buffer <= max_tile_bytes, (c) does not exceed m.
        rows_cap = max(sublane_min, max_tile_bytes // (512 * itemsize))
        rows_cap = (rows_cap // sublane_min) * sublane_min
        tm = min(rows_cap, (m // sublane_min) * sublane_min)

    grid = (pl.cdiv(m, tm),)  # trailing partial block (if any) is masked by Pallas

    # 2 arrays x 2 pipeline buffers per tile, plus slack; clamp to a safe range
    # (stays far below v7x's 64 MiB physical VMEM).
    vmem_budget = 4 * tm * 512 * itemsize + (1 << 20)
    vmem_limit = int(min(max(vmem_budget, 8 << 20), 32 << 20))

    out = pl.pallas_call(
        _view_copy_kernel,
        out_shape=jax.ShapeDtypeStruct((m, 512), x.dtype),
        grid_spec=pltpu.PrefetchScalarGridSpec(
            num_scalar_prefetch=0,
            grid=grid,
            in_specs=[pl.BlockSpec((tm, 512), lambda i: (i, 0))],
            out_specs=pl.BlockSpec((tm, 512), lambda i: (i, 0)),
        ),
        compiler_params=pltpu.CompilerParams(
            dimension_semantics=("parallel",),
            vmem_limit_bytes=vmem_limit,
        ),
    )(x2d)
    return out


if __name__ == "__main__":
    # NCHW input: 2 * 32 * 16 * 16 = 16384 elements -> view to (32, 512)
    key = jax.random.PRNGKey(0)
    x = jax.random.normal(key, (2, 32, 16, 16), dtype=jnp.float32)

    ref = jnp.reshape(x, (-1, 512))

    # Default forward path (metadata-only, the recommended implementation).
    y_view = view_512(x)
    jax.block_until_ready(y_view)
    assert y_view.shape == (32, 512), y_view.shape
    assert y_view.dtype == x.dtype
    assert bool(jnp.array_equal(y_view, ref))

    # Materialized Pallas copy path (exercises the kernel), f32.
    y_copy = view_512_materialized(x)
    jax.block_until_ready(y_copy)
    assert y_copy.shape == (32, 512), y_copy.shape
    assert y_copy.dtype == x.dtype
    assert bool(jnp.array_equal(y_copy, ref))

    # Sub-32-bit dtype sanity check (sublane-minimum-aware tiling).
    x_bf16 = x.astype(jnp.bfloat16)
    y_bf16 = view_512_materialized(x_bf16)
    jax.block_until_ready(y_bf16)
    assert bool(jnp.array_equal(y_bf16, jnp.reshape(x_bf16, (-1, 512))))

    print("KERNEL_OK")
</pallas_src>

<mosaic_0001>
module attributes {stable_mosaic.version = 11 : i64} {
  func.func @_view_copy_kernel(%arg0: i32, %arg1: memref<32x512xf32, #tpu.memory_space<vmem>>, %arg2: memref<32x512xf32, #tpu.memory_space<vmem>>) attributes {dimension_semantics = [#tpu.dimension_semantics<parallel>], iteration_bounds = array<i64: 1>, scalar_prefetch = 0 : i64, scratch_operands = 0 : i64, tpu.core_type = #tpu.core_type<tc>, window_params = [{transform_indices = @transform_0, window_bounds = array<i64: 32, 512>}, {transform_indices = @transform_1, window_bounds = array<i64: 32, 512>}]} {
    %c0 = arith.constant 0 : index
    %c0_0 = arith.constant 0 : index
    %0 = vector.load %arg1[%c0, %c0_0] : memref<32x512xf32, #tpu.memory_space<vmem>>, vector<32x512xf32>
    %c0_1 = arith.constant 0 : index
    %c0_2 = arith.constant 0 : index
    %1 = vector.load %arg2[%c0_1, %c0_2] : memref<32x512xf32, #tpu.memory_space<vmem>>, vector<32x512xf32>
    tpu.vector_store %arg2[%c0_1, %c0_2], %0 {strides = array<i32>} : memref<32x512xf32, #tpu.memory_space<vmem>>, vector<32x512xf32>,
    return
  }
  func.func @transform_0(%arg0: i32) -> (i32, i32) {
    %c0_i32 = arith.constant 0 : i32
    %c0_i32_0 = arith.constant 0 : i32
    return %arg0, %c0_i32 : i32, i32
  }
  func.func @transform_1(%arg0: i32) -> (i32, i32) {
    %c0_i32 = arith.constant 0 : i32
    %c0_i32_0 = arith.constant 0 : i32
    return %arg0, %c0_i32 : i32, i32
  }
}

</mosaic_0001>

<llo_original>
// kernel: tpu_custom_call.1
$region0: #{tpu_custom_call.1}
  #allocation0 [shape = 'u32[]', space=smem, size = 0x4, offset = 0x4, fixed_abs, tag = 'smem constant byte address 0x4 - core index']
  #allocation1 [shape = 'u32[144,128]{1,0:T(1,128)}', space=vmem, size = 0x12000, scoped, tag = 'internal scratch']
  %s0 = inlined_call_operand.hbm [shape: f32[32,512], index: 0, kind: input, shape index: {}]
  %s1 = inlined_call_operand.hbm [shape: f32[32,512], index: 1, kind: output, shape index: {}]
  %s2 = sld [smem:[#allocation0]]
  $region18: #{tpu_custom_call.1} parent=0
    _
  %s4 = ssub.s32 1, %s2
  %s5 = scalar_select 0, %s4, %s2
  $region1: #{tpu_custom_call.1} parent=0
    #allocation2 [shape = 'u8[65536]{0}', space=vmem, size = 0x10000, scoped, tag = 'input window, operand 0, single buffered']
    #allocation3 [shape = 's32[1]{0}', space=sflag, size = 0x4, scoped, tag = 'scoped memory for tpu_custom_call.1']
    #allocation4 [shape = 's32[1]{0}', space=sflag, size = 0x4, scoped, tag = 'scoped memory for tpu_custom_call.1']
    #allocation5 [shape = 'u8[65536]{0}', space=vmem, size = 0x10000, scoped, tag = 'output window, operand 0, single buffered']
    %6 = vsyncpa [#allocation3], 0
    %7 = vsyncpa [#allocation4], 0
    // Predicated region
    $region2: #{tpu_custom_call.1} parent=1 // pred_check
      _
    $region3: #{tpu_custom_call.1} parent=1 // pred_check_branch
      %9 = sbr.rel (0) target = $region5
    $region4: #{tpu_custom_call.1} parent=1 // pred_region
      %s11 = ssub.s32 2048, 2048
      %12 = vsyncadd [#allocation3], %s11
      %s13 = sshll.u32 [#allocation2], 4
      %s14 = int_to_ptr.vmem [resolvable:$true] %s13
      %19 = dma.hbm_to_vmem [thread:$0]  %s0, 2048, %s14, [#allocation3], 512, 512, 32
    $region5: #{tpu_custom_call.1} parent=1 // pred_fallthru
      _
    // Predicated region
    $region6: #{tpu_custom_call.1} parent=1 // pred_check
      _
    $region7: #{tpu_custom_call.1} parent=1 // pred_check_branch
      %21 = sbr.rel (0) target = $region9
    $region8: #{tpu_custom_call.1} parent=1 // pred_region
      %22 = dma.done [#allocation3], 2048
    $region9: #{tpu_custom_call.1} parent=1 // pred_fallthru
      _
    %v23 = vld [vmem:[#allocation2] sm:$0xff]
    %v24 = vld [vmem:[#allocation2 + $0x8] sm:$0xff]
    %v25 = vld [vmem:[#allocation2 + $0x10] sm:$0xff]
    %v26 = vld [vmem:[#allocation2 + $0x18] sm:$0xff]
    %v27 = vld [vmem:[#allocation2 + $0x20] sm:$0xff]
    %v28 = vld [vmem:[#allocation2 + $0x28] sm:$0xff]
    %v29 = vld [vmem:[#allocation2 + $0x30] sm:$0xff]
    %v30 = vld [vmem:[#allocation2 + $0x38] sm:$0xff]
    %v31 = vld [vmem:[#allocation2 + $0x40] sm:$0xff]
    %v32 = vld [vmem:[#allocation2 + $0x48] sm:$0xff]
    %v33 = vld [vmem:[#allocation2 + $0x50] sm:$0xff]
    %v34 = vld [vmem:[#allocation2 + $0x58] sm:$0xff]
    %v35 = vld [vmem:[#allocation2 + $0x60] sm:$0xff]
    %v36 = vld [vmem:[#allocation2 + $0x68] sm:$0xff]
    %v37 = vld [vmem:[#allocation2 + $0x70] sm:$0xff]
    %v38 = vld [vmem:[#allocation2 + $0x78] sm:$0xff]
    %39 = vst [vmem:[#allocation5] sm:$0xff] %v23
    %40 = vst [vmem:[#allocation5 + $0x8] sm:$0xff] %v24
    %41 = vst [vmem:[#allocation5 + $0x10] sm:$0xff] %v25
    %42 = vst [vmem:[#allocation5 + $0x18] sm:$0xff] %v26
    %43 = vst [vmem:[#allocation5 + $0x20] sm:$0xff] %v27
    %44 = vst [vmem:[#allocation5 + $0x28] sm:$0xff] %v28
    %45 = vst [vmem:[#allocation5 + $0x30] sm:$0xff] %v29
    %46 = vst [vmem:[#allocation5 + $0x38] sm:$0xff] %v30
    %47 = vst [vmem:[#allocation5 + $0x40] sm:$0xff] %v31
    %48 = vst [vmem:[#allocation5 + $0x48] sm:$0xff] %v32
    %49 = vst [vmem:[#allocation5 + $0x50] sm:$0xff] %v33
    %50 = vst [vmem:[#allocation5 + $0x58] sm:$0xff] %v34
    %51 = vst [vmem:[#allocation5 + $0x60] sm:$0xff] %v35
    %52 = vst [vmem:[#allocation5 + $0x68] sm:$0xff] %v36
    %53 = vst [vmem:[#allocation5 + $0x70] sm:$0xff] %v37
    %54 = vst [vmem:[#allocation5 + $0x78] sm:$0xff] %v38
    // Predicated region
    $region10: #{tpu_custom_call.1} parent=1 // pred_check
      _
    $region11: #{tpu_custom_call.1} parent=1 // pred_check_branch
      %56 = sbr.rel (0) target = $region13
    $region12: #{tpu_custom_call.1} parent=1 // pred_region
      %s58 = ssub.s32 2048, 2048
      %59 = vsyncadd [#allocation4], %s58
      %s60 = sshll.u32 [#allocation5], 4
      %s61 = int_to_ptr.vmem [resolvable:$true] %s60
      %66 = dma.vmem_to_hbm [thread:$0]  %s61, 2048, %s1, [#allocation4], 512, 512, 32
    $region13: #{tpu_custom_call.1} parent=1 // pred_fallthru
      _
    // Predicated region
    $region14: #{tpu_custom_call.1} parent=1 // pred_check
      _
    $region15: #{tpu_custom_call.1} parent=1 // pred_check_branch
      %68 = sbr.rel (0) target = $region17
    $region16: #{tpu_custom_call.1} parent=1 // pred_region
      %69 = dma.done [#allocation4], 2048
    $region17: #{tpu_custom_call.1} parent=1 // pred_fallthru
      _
    %70 = vsyncpa [#allocation3], 1
    %71 = vsyncpa [#allocation4], 1

</llo_original>
